<compile_context>
chip_gen: v7x
topology: tpu7x:2x2x1
jax: 0.10.0
libtpu: 0.0.40
codegen_flags: <defaults>
</compile_context>

<pallas_src>
import jax
import jax.numpy as jnp
from jax import lax
from jax.experimental import pallas as pl
from jax.experimental.pallas import tpu as pltpu


def rnd_mlp_kernel(s_ref, obs_ref, w1_ref, p1_ref, w2_hbm, p2_ref, ri_ref,
                   out_ref, w2_vmem, w2_sem):
    H = w1_ref.shape[1] // 2

    # ---- kick off the w2 DMA immediately; it overlaps layer-1 compute ----
    w2_cp = pltpu.make_async_copy(w2_hbm, w2_vmem, w2_sem)
    w2_cp.start()

    # ---- obs normalization: clip((s - mean) / (sqrt(var) + 1e-7), -5, 5) ----
    om = obs_ref[0:1, :]                                   # rms_obs.mean  (1, D_in)
    ov = obs_ref[1:2, :]                                   # rms_obs.var   (1, D_in)
    inv_std = 1.0 / (jnp.sqrt(ov) + 1e-7)                  # exact, single feature row
    s = jnp.clip((s_ref[...] - om) * inv_std, -5.0, 5.0)   # (N, D_in) f32

    # ---- fused layer 1: [predictor | target] in one matmul ----
    b1 = p1_ref[0:1, :]                                    # (1, 2H)
    g1 = p1_ref[1:2, :]
    be1 = p1_ref[2:3, :]
    z1 = jnp.dot(s.astype(jnp.bfloat16), w1_ref[...],
                 preferred_element_type=jnp.float32) + b1   # (N, 2H) f32
    mu1 = jnp.mean(z1, axis=0, keepdims=True)
    var1 = jnp.maximum(jnp.mean(z1 * z1, axis=0, keepdims=True) - mu1 * mu1, 0.0)
    sc1 = g1 * lax.rsqrt(var1 + 1e-5)                      # one rsqrt per feature row
    # relu(BN(.)); h is only consumed as an MXU LHS -> store bf16 once
    h = jnp.maximum(z1 * sc1 + (be1 - mu1 * sc1), 0.0).astype(jnp.bfloat16)   # (N, 2H)

    # ---- layer 2: per-head matmul + per-head BN (== BN over the concat) ----
    w2_cp.wait()                                           # w2 now resident in VMEM

    def head(hx, w2, pp):
        b2 = pp[0:1, :]                                    # (1, F)
        g2 = pp[1:2, :]
        be2 = pp[2:3, :]
        z2 = jnp.dot(hx, w2, preferred_element_type=jnp.float32) + b2   # (N, F) f32
        mu2 = jnp.mean(z2, axis=0, keepdims=True)
        var2 = jnp.maximum(jnp.mean(z2 * z2, axis=0, keepdims=True) - mu2 * mu2, 0.0)
        sc2 = g2 * lax.rsqrt(var2 + 1e-5)
        return jnp.maximum(z2 * sc2 + (be2 - mu2 * sc2), 0.0)

    yp = head(h[:, :H], w2_vmem[0], p2_ref[0])             # predictor (N, F)
    yt = head(h[:, H:], w2_vmem[1], p2_ref[1])             # target    (N, F)

    # ---- intrinsic reward: mean((p - t)^2, axis=1) * 1/(sqrt(ri_var)+1e-7) ----
    d = yp - yt
    out_ref[...] = jnp.sum(d * d, axis=1, keepdims=True) * ri_ref[0]   # (N, 1)


def rnd_mlp_forward(s_next, params):
    """Returns r_i of shape (N,)."""
    N = s_next.shape[0]
    H = params["w2"].shape[1]
    F = params["w2"].shape[2]
    # ri normalization scale (with the 1/F of the row-mean folded in) -> one SMEM scalar
    ri_scale = (1.0 / (F * (jnp.sqrt(params["ri_var"]) + 1e-7))
                ).reshape((1,)).astype(jnp.float32)

    vmem = pl.BlockSpec(memory_space=pltpu.MemorySpace.VMEM)
    smem = pl.BlockSpec(memory_space=pltpu.MemorySpace.SMEM)
    hbm = pl.BlockSpec(memory_space=pl.ANY)   # manual DMA inside the kernel

    out = pl.pallas_call(
        rnd_mlp_kernel,
        out_shape=jax.ShapeDtypeStruct((N, 1), jnp.float32),
        in_specs=[vmem, vmem, vmem, vmem, hbm, vmem, smem],
        out_specs=vmem,
        scratch_shapes=[
            pltpu.VMEM((2, H, F), jnp.bfloat16),   # w2 double-head buffer
            pltpu.SemaphoreType.DMA(()),
        ],
    )(
        s_next,                # (N, D_in)     f32
        params["obs_stats"],   # (2, D_in)     f32: [mean; var]
        params["w1"],          # (D_in, 2H)    bf16: [W1_pred | W1_targ]
        params["p1"],          # (3, 2H)       f32: [b1; gamma1; beta1] (pred|targ)
        params["w2"],          # (2, H, F)     bf16: stacked [W2_pred, W2_targ]
        params["p2"],          # (2, 3, F)     f32: per head [b2; gamma2; beta2]
        ri_scale,              # (1,)          f32, SMEM
    )
    return out[:, 0]


def rnd_mlp_reference(s_next, params):
    """Pure-JAX f32 reference of the torch forward (same packed params)."""
    om, ov = params["obs_stats"][0], params["obs_stats"][1]
    s = jnp.clip((s_next - om) / (jnp.sqrt(ov) + 1e-7), -5.0, 5.0)
    w1 = params["w1"].astype(jnp.float32)
    H = w1.shape[1] // 2
    b1, g1, be1 = params["p1"][0], params["p1"][1], params["p1"][2]
    z1 = s @ w1 + b1
    mu1 = z1.mean(0)
    var1 = ((z1 - mu1) ** 2).mean(0)
    h = jnp.maximum((z1 - mu1) * lax.rsqrt(var1 + 1e-5) * g1 + be1, 0.0)

    def head(hx, w2, pp):
        z2 = hx @ w2.astype(jnp.float32) + pp[0]
        mu2 = z2.mean(0)
        var2 = ((z2 - mu2) ** 2).mean(0)
        return jnp.maximum((z2 - mu2) * lax.rsqrt(var2 + 1e-5) * pp[1] + pp[2], 0.0)

    yp = head(h[:, :H], params["w2"][0], params["p2"][0])
    yt = head(h[:, H:], params["w2"][1], params["p2"][1])
    r = jnp.mean((yp - yt) ** 2, axis=1)
    return r / (jnp.sqrt(params["ri_var"][0, 0]) + 1e-7)


def init_params(key, D_in, D_hidden=256, feature_size=256):
    """Torch-style init (Linear: U(-1/sqrt(fan_in), .); BN: gamma=1, beta=0;
    RunningMeanStd: mean=0, var=1), packed into the kernel's fused layout."""
    ks = jax.random.split(key, 8)

    def linear(kw, kb, fan_in, fan_out):
        bound = 1.0 / jnp.sqrt(float(fan_in))
        w = jax.random.uniform(kw, (fan_in, fan_out), jnp.float32, -bound, bound)
        b = jax.random.uniform(kb, (1, fan_out), jnp.float32, -bound, bound)
        return w, b

    w1p, b1p = linear(ks[0], ks[1], D_in, D_hidden)
    w2p, b2p = linear(ks[2], ks[3], D_hidden, feature_size)
    w1t, b1t = linear(ks[4], ks[5], D_in, D_hidden)
    w2t, b2t = linear(ks[6], ks[7], D_hidden, feature_size)

    H2, F = 2 * D_hidden, feature_size
    w1 = jnp.concatenate([w1p, w1t], axis=1).astype(jnp.bfloat16)            # (D_in, 2H)
    p1 = jnp.concatenate(
        [jnp.concatenate([b1p, b1t], axis=1),
         jnp.ones((1, H2), jnp.float32),
         jnp.zeros((1, H2), jnp.float32)], axis=0)                           # (3, 2H)
    w2 = jnp.stack([w2p, w2t], axis=0).astype(jnp.bfloat16)                  # (2, H, F)
    p2 = jnp.stack(
        [jnp.concatenate([b2p, jnp.ones((1, F)), jnp.zeros((1, F))], axis=0),
         jnp.concatenate([b2t, jnp.ones((1, F)), jnp.zeros((1, F))], axis=0)],
        axis=0)                                                              # (2, 3, F)
    obs_stats = jnp.concatenate(
        [jnp.zeros((1, D_in), jnp.float32),                                  # rms_obs.mean
         jnp.ones((1, D_in), jnp.float32)], axis=0)                          # rms_obs.var

    return dict(w1=w1, p1=p1, w2=w2, p2=p2, obs_stats=obs_stats,
                ri_var=jnp.ones((1, 1), jnp.float32))


if __name__ == "__main__":
    # Small shapes consistent with the module: D_in=32 obs features, batch N=8,
    # D_hidden=256, feature_size=256 (module default).
    # TODO(synk): update_ri=True path (RewardForwardFilter / RunningMeanStd updates) is
    # host-side stateful bookkeeping and is not part of this forward kernel.
    key = jax.random.PRNGKey(0)
    k_param, k_obs = jax.random.split(key)

    N, D_in = 8, 32
    params = init_params(k_param, D_in, D_hidden=256, feature_size=256)
    s_next = jax.random.normal(k_obs, (N, D_in), jnp.float32)

    r_i = rnd_mlp_forward(s_next, params)
    jax.block_until_ready(r_i)
    assert r_i.shape == (N,)
    assert bool(jnp.all(jnp.isfinite(r_i)))

    # Validate against the f32 pure-JAX reference (bf16 activation casts in the kernel
    # introduce small error; tolerance is generous accordingly).
    r_ref = rnd_mlp_reference(s_next, params)
    rel_err = float(jnp.max(jnp.abs(r_i - r_ref) / (jnp.abs(r_ref) + 1e-8)))
    assert rel_err < 0.1, f"relative error too large: {rel_err}"

    print("KERNEL_OK")
</pallas_src>

<mosaic_0001>
module attributes {stable_mosaic.version = 11 : i64} {
  func.func @rnd_mlp_kernel(%arg0: memref<8x32xf32, #tpu.memory_space<vmem>>, %arg1: memref<2x32xf32, #tpu.memory_space<vmem>>, %arg2: memref<32x512xbf16, #tpu.memory_space<vmem>>, %arg3: memref<3x512xf32, #tpu.memory_space<vmem>>, %arg4: memref<2x256x256xbf16, #tpu.memory_space<any>>, %arg5: memref<2x3x256xf32, #tpu.memory_space<vmem>>, %arg6: memref<1xf32, #tpu.memory_space<smem>>, %arg7: memref<8x1xf32, #tpu.memory_space<vmem>>, %arg8: memref<2x256x256xbf16, #tpu.memory_space<vmem>>, %arg9: memref<!tpu.dma_semaphore, #tpu.memory_space<semaphore_mem>>) attributes {dimension_semantics = [], scalar_prefetch = 0 : i64, scratch_operands = 2 : i64, tpu.core_type = #tpu.core_type<tc>} {
    tpu.enqueue_dma source(%arg4 : memref<2x256x256xbf16, #tpu.memory_space<any>>) target(%arg8 : memref<2x256x256xbf16, #tpu.memory_space<vmem>>) target_semaphore(%arg9 : memref<!tpu.dma_semaphore, #tpu.memory_space<semaphore_mem>>)
    %c0 = arith.constant 0 : index
    %c0_0 = arith.constant 0 : index
    %0 = vector.load %arg1[%c0, %c0_0] : memref<2x32xf32, #tpu.memory_space<vmem>>, vector<1x32xf32>
    %c1 = arith.constant 1 : index
    %c0_1 = arith.constant 0 : index
    %1 = vector.load %arg1[%c1, %c0_1] : memref<2x32xf32, #tpu.memory_space<vmem>>, vector<1x32xf32>
    %2 = math.sqrt %1 : vector<1x32xf32>
    %cst = arith.constant 1.000000e-07 : f32
    %3 = vector.broadcast %cst : f32 to vector<1x32xf32>
    %4 = arith.addf %2, %3 : vector<1x32xf32>
    %cst_2 = arith.constant 1.000000e+00 : f32
    %5 = vector.broadcast %cst_2 : f32 to vector<1x32xf32>
    %6 = arith.divf %5, %4 : vector<1x32xf32>
    %c0_3 = arith.constant 0 : index
    %c0_4 = arith.constant 0 : index
    %7 = vector.load %arg0[%c0_3, %c0_4] : memref<8x32xf32, #tpu.memory_space<vmem>>, vector<8x32xf32>
    %8 = vector.broadcast %0 : vector<1x32xf32> to vector<8x32xf32>
    %9 = arith.subf %7, %8 : vector<8x32xf32>
    %10 = vector.broadcast %6 : vector<1x32xf32> to vector<8x32xf32>
    %11 = arith.mulf %9, %10 : vector<8x32xf32>
    %cst_5 = arith.constant -5.000000e+00 : f32
    %cst_6 = arith.constant 5.000000e+00 : f32
    %12 = vector.broadcast %cst_5 : f32 to vector<8x32xf32>
    %13 = arith.maximumf %12, %11 : vector<8x32xf32>
    %14 = vector.broadcast %cst_6 : f32 to vector<8x32xf32>
    %15 = arith.minimumf %14, %13 : vector<8x32xf32>
    %c0_7 = arith.constant 0 : index
    %c0_8 = arith.constant 0 : index
    %16 = vector.load %arg3[%c0_7, %c0_8] : memref<3x512xf32, #tpu.memory_space<vmem>>, vector<1x512xf32>
    %c1_9 = arith.constant 1 : index
    %c0_10 = arith.constant 0 : index
    %17 = vector.load %arg3[%c1_9, %c0_10] : memref<3x512xf32, #tpu.memory_space<vmem>>, vector<1x512xf32>
    %c2 = arith.constant 2 : index
    %c0_11 = arith.constant 0 : index
    %18 = vector.load %arg3[%c2, %c0_11] : memref<3x512xf32, #tpu.memory_space<vmem>>, vector<1x512xf32>
    %19 = arith.truncf %15 : vector<8x32xf32> to vector<8x32xbf16>
    %c0_12 = arith.constant 0 : index
    %c0_13 = arith.constant 0 : index
    %20 = vector.load %arg2[%c0_12, %c0_13] : memref<32x512xbf16, #tpu.memory_space<vmem>>, vector<32x512xbf16>
    %cst_14 = arith.constant dense<0.000000e+00> : vector<8x512xf32>
    %21 = tpu.matmul %19, %20, %cst_14 {dimension_numbers = #tpu.dot_dimension_numbers<[1], [0], [0], [1], [0, 0, 1, 1], [], []>} : vector<8x32xbf16>, vector<32x512xbf16>, vector<8x512xf32> -> vector<8x512xf32>
    %22 = vector.broadcast %16 : vector<1x512xf32> to vector<8x512xf32>
    %23 = arith.addf %21, %22 : vector<8x512xf32>
    %cst_15 = arith.constant dense<0.000000e+00> : vector<512xf32>
    %24 = vector.multi_reduction <add>, %23, %cst_15 [0] : vector<8x512xf32> to vector<512xf32>
    %25 = vector.shape_cast %24 : vector<512xf32> to vector<1x512xf32>
    %cst_16 = arith.constant 8.000000e+00 : f32
    %26 = vector.broadcast %cst_16 : f32 to vector<1x512xf32>
    %27 = arith.divf %25, %26 : vector<1x512xf32>
    %28 = arith.mulf %23, %23 : vector<8x512xf32>
    %cst_17 = arith.constant dense<0.000000e+00> : vector<512xf32>
    %29 = vector.multi_reduction <add>, %28, %cst_17 [0] : vector<8x512xf32> to vector<512xf32>
    %30 = vector.shape_cast %29 : vector<512xf32> to vector<1x512xf32>
    %cst_18 = arith.constant 8.000000e+00 : f32
    %31 = vector.broadcast %cst_18 : f32 to vector<1x512xf32>
    %32 = arith.divf %30, %31 : vector<1x512xf32>
    %33 = arith.mulf %27, %27 : vector<1x512xf32>
    %34 = arith.subf %32, %33 : vector<1x512xf32>
    %cst_19 = arith.constant 0.000000e+00 : f32
    %35 = vector.broadcast %cst_19 : f32 to vector<1x512xf32>
    %36 = arith.maximumf %34, %35 : vector<1x512xf32>
    %cst_20 = arith.constant 9.99999974E-6 : f32
    %37 = vector.broadcast %cst_20 : f32 to vector<1x512xf32>
    %38 = arith.addf %36, %37 : vector<1x512xf32>
    %39 = math.rsqrt %38 : vector<1x512xf32>
    %40 = arith.mulf %17, %39 : vector<1x512xf32>
    %41 = vector.broadcast %40 : vector<1x512xf32> to vector<8x512xf32>
    %42 = arith.mulf %23, %41 : vector<8x512xf32>
    %43 = arith.mulf %27, %40 : vector<1x512xf32>
    %44 = arith.subf %18, %43 : vector<1x512xf32>
    %45 = vector.broadcast %44 : vector<1x512xf32> to vector<8x512xf32>
    %46 = arith.addf %42, %45 : vector<8x512xf32>
    %cst_21 = arith.constant 0.000000e+00 : f32
    %47 = vector.broadcast %cst_21 : f32 to vector<8x512xf32>
    %48 = arith.maximumf %46, %47 : vector<8x512xf32>
    %49 = arith.truncf %48 : vector<8x512xf32> to vector<8x512xbf16>
    tpu.wait_dma2 semaphore(%arg9 : memref<!tpu.dma_semaphore, #tpu.memory_space<semaphore_mem>>) src(%arg4 : memref<2x256x256xbf16, #tpu.memory_space<any>>) dst(%arg8 : memref<2x256x256xbf16, #tpu.memory_space<vmem>>)
    %50 = vector.extract_strided_slice %49 {offsets = [0, 0], sizes = [8, 256], strides = [1, 1]} : vector<8x512xbf16> to vector<8x256xbf16>
    %c0_22 = arith.constant 0 : index
    %c0_23 = arith.constant 0 : index
    %c0_24 = arith.constant 0 : index
    %51 = vector.load %arg8[%c0_22, %c0_23, %c0_24] : memref<2x256x256xbf16, #tpu.memory_space<vmem>>, vector<1x256x256xbf16>
    %52 = vector.shape_cast %51 : vector<1x256x256xbf16> to vector<256x256xbf16>
    %c0_25 = arith.constant 0 : index
    %c0_26 = arith.constant 0 : index
    %c0_27 = arith.constant 0 : index
    %53 = vector.load %arg5[%c0_25, %c0_26, %c0_27] : memref<2x3x256xf32, #tpu.memory_space<vmem>>, vector<1x3x256xf32>
    %54 = vector.shape_cast %53 : vector<1x3x256xf32> to vector<3x256xf32>
    %55 = vector.extract_strided_slice %54 {offsets = [0, 0], sizes = [1, 256], strides = [1, 1]} : vector<3x256xf32> to vector<1x256xf32>
    %56 = vector.extract_strided_slice %54 {offsets = [1, 0], sizes = [1, 256], strides = [1, 1]} : vector<3x256xf32> to vector<1x256xf32>
    %57 = vector.extract_strided_slice %54 {offsets = [2, 0], sizes = [1, 256], strides = [1, 1]} : vector<3x256xf32> to vector<1x256xf32>
    %cst_28 = arith.constant dense<0.000000e+00> : vector<8x256xf32>
    %58 = tpu.matmul %50, %52, %cst_28 {dimension_numbers = #tpu.dot_dimension_numbers<[1], [0], [0], [1], [0, 0, 1, 1], [], []>} : vector<8x256xbf16>, vector<256x256xbf16>, vector<8x256xf32> -> vector<8x256xf32>
    %59 = vector.broadcast %55 : vector<1x256xf32> to vector<8x256xf32>
    %60 = arith.addf %58, %59 : vector<8x256xf32>
    %cst_29 = arith.constant dense<0.000000e+00> : vector<256xf32>
    %61 = vector.multi_reduction <add>, %60, %cst_29 [0] : vector<8x256xf32> to vector<256xf32>
    %62 = vector.shape_cast %61 : vector<256xf32> to vector<1x256xf32>
    %cst_30 = arith.constant 8.000000e+00 : f32
    %63 = vector.broadcast %cst_30 : f32 to vector<1x256xf32>
    %64 = arith.divf %62, %63 : vector<1x256xf32>
    %65 = arith.mulf %60, %60 : vector<8x256xf32>
    %cst_31 = arith.constant dense<0.000000e+00> : vector<256xf32>
    %66 = vector.multi_reduction <add>, %65, %cst_31 [0] : vector<8x256xf32> to vector<256xf32>
    %67 = vector.shape_cast %66 : vector<256xf32> to vector<1x256xf32>
    %cst_32 = arith.constant 8.000000e+00 : f32
    %68 = vector.broadcast %cst_32 : f32 to vector<1x256xf32>
    %69 = arith.divf %67, %68 : vector<1x256xf32>
    %70 = arith.mulf %64, %64 : vector<1x256xf32>
    %71 = arith.subf %69, %70 : vector<1x256xf32>
    %cst_33 = arith.constant 0.000000e+00 : f32
    %72 = vector.broadcast %cst_33 : f32 to vector<1x256xf32>
    %73 = arith.maximumf %71, %72 : vector<1x256xf32>
    %cst_34 = arith.constant 9.99999974E-6 : f32
    %74 = vector.broadcast %cst_34 : f32 to vector<1x256xf32>
    %75 = arith.addf %73, %74 : vector<1x256xf32>
    %76 = math.rsqrt %75 : vector<1x256xf32>
    %77 = arith.mulf %56, %76 : vector<1x256xf32>
    %78 = vector.broadcast %77 : vector<1x256xf32> to vector<8x256xf32>
    %79 = arith.mulf %60, %78 : vector<8x256xf32>
    %80 = arith.mulf %64, %77 : vector<1x256xf32>
    %81 = arith.subf %57, %80 : vector<1x256xf32>
    %82 = vector.broadcast %81 : vector<1x256xf32> to vector<8x256xf32>
    %83 = arith.addf %79, %82 : vector<8x256xf32>
    %cst_35 = arith.constant 0.000000e+00 : f32
    %84 = vector.broadcast %cst_35 : f32 to vector<8x256xf32>
    %85 = arith.maximumf %83, %84 : vector<8x256xf32>
    %86 = vector.extract_strided_slice %49 {offsets = [0, 256], sizes = [8, 256], strides = [1, 1]} : vector<8x512xbf16> to vector<8x256xbf16>
    %c1_36 = arith.constant 1 : index
    %c0_37 = arith.constant 0 : index
    %c0_38 = arith.constant 0 : index
    %87 = vector.load %arg8[%c1_36, %c0_37, %c0_38] : memref<2x256x256xbf16, #tpu.memory_space<vmem>>, vector<1x256x256xbf16>
    %88 = vector.shape_cast %87 : vector<1x256x256xbf16> to vector<256x256xbf16>
    %c1_39 = arith.constant 1 : index
    %c0_40 = arith.constant 0 : index
    %c0_41 = arith.constant 0 : index
    %89 = vector.load %arg5[%c1_39, %c0_40, %c0_41] : memref<2x3x256xf32, #tpu.memory_space<vmem>>, vector<1x3x256xf32>
    %90 = vector.shape_cast %89 : vector<1x3x256xf32> to vector<3x256xf32>
    %91 = vector.extract_strided_slice %90 {offsets = [0, 0], sizes = [1, 256], strides = [1, 1]} : vector<3x256xf32> to vector<1x256xf32>
    %92 = vector.extract_strided_slice %90 {offsets = [1, 0], sizes = [1, 256], strides = [1, 1]} : vector<3x256xf32> to vector<1x256xf32>
    %93 = vector.extract_strided_slice %90 {offsets = [2, 0], sizes = [1, 256], strides = [1, 1]} : vector<3x256xf32> to vector<1x256xf32>
    %cst_42 = arith.constant dense<0.000000e+00> : vector<8x256xf32>
    %94 = tpu.matmul %86, %88, %cst_42 {dimension_numbers = #tpu.dot_dimension_numbers<[1], [0], [0], [1], [0, 0, 1, 1], [], []>} : vector<8x256xbf16>, vector<256x256xbf16>, vector<8x256xf32> -> vector<8x256xf32>
    %95 = vector.broadcast %91 : vector<1x256xf32> to vector<8x256xf32>
    %96 = arith.addf %94, %95 : vector<8x256xf32>
    %cst_43 = arith.constant dense<0.000000e+00> : vector<256xf32>
    %97 = vector.multi_reduction <add>, %96, %cst_43 [0] : vector<8x256xf32> to vector<256xf32>
    %98 = vector.shape_cast %97 : vector<256xf32> to vector<1x256xf32>
    %cst_44 = arith.constant 8.000000e+00 : f32
    %99 = vector.broadcast %cst_44 : f32 to vector<1x256xf32>
    %100 = arith.divf %98, %99 : vector<1x256xf32>
    %101 = arith.mulf %96, %96 : vector<8x256xf32>
    %cst_45 = arith.constant dense<0.000000e+00> : vector<256xf32>
    %102 = vector.multi_reduction <add>, %101, %cst_45 [0] : vector<8x256xf32> to vector<256xf32>
    %103 = vector.shape_cast %102 : vector<256xf32> to vector<1x256xf32>
    %cst_46 = arith.constant 8.000000e+00 : f32
    %104 = vector.broadcast %cst_46 : f32 to vector<1x256xf32>
    %105 = arith.divf %103, %104 : vector<1x256xf32>
    %106 = arith.mulf %100, %100 : vector<1x256xf32>
    %107 = arith.subf %105, %106 : vector<1x256xf32>
    %cst_47 = arith.constant 0.000000e+00 : f32
    %108 = vector.broadcast %cst_47 : f32 to vector<1x256xf32>
    %109 = arith.maximumf %107, %108 : vector<1x256xf32>
    %cst_48 = arith.constant 9.99999974E-6 : f32
    %110 = vector.broadcast %cst_48 : f32 to vector<1x256xf32>
    %111 = arith.addf %109, %110 : vector<1x256xf32>
    %112 = math.rsqrt %111 : vector<1x256xf32>
    %113 = arith.mulf %92, %112 : vector<1x256xf32>
    %114 = vector.broadcast %113 : vector<1x256xf32> to vector<8x256xf32>
    %115 = arith.mulf %96, %114 : vector<8x256xf32>
    %116 = arith.mulf %100, %113 : vector<1x256xf32>
    %117 = arith.subf %93, %116 : vector<1x256xf32>
    %118 = vector.broadcast %117 : vector<1x256xf32> to vector<8x256xf32>
    %119 = arith.addf %115, %118 : vector<8x256xf32>
    %cst_49 = arith.constant 0.000000e+00 : f32
    %120 = vector.broadcast %cst_49 : f32 to vector<8x256xf32>
    %121 = arith.maximumf %119, %120 : vector<8x256xf32>
    %122 = arith.subf %85, %121 : vector<8x256xf32>
    %123 = arith.mulf %122, %122 : vector<8x256xf32>
    %cst_50 = arith.constant dense<0.000000e+00> : vector<8xf32>
    %124 = vector.multi_reduction <add>, %123, %cst_50 [1] : vector<8x256xf32> to vector<8xf32>
    %125 = vector.shape_cast %124 : vector<8xf32> to vector<8x1xf32>
    %c0_51 = arith.constant 0 : index
    %126 = memref.load %arg6[%c0_51] : memref<1xf32, #tpu.memory_space<smem>>
    %127 = vector.broadcast %126 : f32 to vector<8x1xf32>
    %128 = arith.mulf %125, %127 : vector<8x1xf32>
    %c0_52 = arith.constant 0 : index
    %c0_53 = arith.constant 0 : index
    %129 = vector.load %arg7[%c0_52, %c0_53] : memref<8x1xf32, #tpu.memory_space<vmem>>, vector<8x1xf32>
    tpu.vector_store %arg7[%c0_52, %c0_53], %128 {strides = array<i32>} : memref<8x1xf32, #tpu.memory_space<vmem>>, vector<8x1xf32>,
    return
  }
}

</mosaic_0001>

<llo_original>
// kernel: tpu_custom_call.1
$region0: #{tpu_custom_call.1}
  #allocation0 [shape = 'u32[]', space=smem, size = 0x4, offset = 0x4, fixed_abs, tag = 'smem constant byte address 0x4 - core index']
  #allocation1 [shape = 'u32[144,128]{1,0:T(1,128)}', space=vmem, size = 0x12000, scoped, tag = 'internal scratch']
  #allocation2 [shape = 'bf16[2,256,256]{2,1,0:T(16,128)(2,1)}', space=vmem, size = 0x40000, scoped, tag = 'scratch operand']
  #allocation3 [shape = 's32[1]{0}', space=sflag, size = 0x4, scoped, tag = 'scratch operand']
  #allocation4 [shape = 'f32[1]{0:T(128)S(6)}', space=smem, size = 0x200, scoped, tag = 'scoped memory for tpu_custom_call.1']
  #allocation7 [shape = 's32[]', space=sflag, size = 0x4, offset = 0, fixed_abs, tag = 'sflag constant byte address 0x0 - dummy sync flag']
  %s0 = inlined_call_operand.vmem [shape: f32[8,32], index: 0, kind: input, shape index: {}]
  %s1 = inlined_call_operand.vmem [shape: f32[2,32], index: 1, kind: input, shape index: {}]
  %s2 = inlined_call_operand.hbm [shape: bf16[32,512], index: 2, kind: input, shape index: {}]
  %s3 = inlined_call_operand.vmem [shape: f32[3,512], index: 3, kind: input, shape index: {}]
  %s4 = inlined_call_operand.hbm [shape: bf16[2,256,256], index: 4, kind: input, shape index: {}]
  %s5 = inlined_call_operand.vmem [shape: f32[2,3,256], index: 5, kind: input, shape index: {}]
  %s6 = inlined_call_operand.<no memory space> [shape: f32[1], index: 6, kind: input, shape index: {}]
  %s7 = inlined_call_operand.vmem [shape: f32[8,1], index: 7, kind: output, shape index: {}]
  %s8 = sld [smem:[#allocation0]]
  $region38: #{tpu_custom_call.1} parent=0
    _
  %s10 = ssub.s32 1, %s8
  %s11 = scalar_select 0, %s10, %s8
  %12 = sst [smem:[#allocation4]] %s6
  $region1: #{tpu_custom_call.1} parent=0
    #allocation5 [shape = 'u8[32768]{0}', space=vmem, size = 0x8000, scoped, tag = 'input window, operand 2, single buffered']
    #allocation6 [shape = 's32[1]{0}', space=sflag, size = 0x4, scoped, tag = 'scoped memory for tpu_custom_call.1']
    #allocation8 [shape = 'u32[9]{0}', space=smem, size = 0x24, scoped, tag = 'DMA stride descriptor']
    %13 = vsyncpa [#allocation6], 0
    // Predicated region
    $region2: #{tpu_custom_call.1} parent=1 // pred_check
      _
    $region3: #{tpu_custom_call.1} parent=1 // pred_check_branch
      %15 = sbr.rel (0) target = $region5
    $region4: #{tpu_custom_call.1} parent=1 // pred_region
      _
    $region5: #{tpu_custom_call.1} parent=1 // pred_fallthru
      _
    // Predicated region
    $region6: #{tpu_custom_call.1} parent=1 // pred_check
      _
    $region7: #{tpu_custom_call.1} parent=1 // pred_check_branch
      %17 = sbr.rel (0) target = $region9
    $region8: #{tpu_custom_call.1} parent=1 // pred_region
      _
    $region9: #{tpu_custom_call.1} parent=1 // pred_fallthru
      _
    // Predicated region
    $region10: #{tpu_custom_call.1} parent=1 // pred_check
      _
    $region11: #{tpu_custom_call.1} parent=1 // pred_check_branch
      %19 = sbr.rel (0) target = $region13
    $region12: #{tpu_custom_call.1} parent=1 // pred_region
      %s21 = ssub.s32 1024, 1024
      %22 = vsyncadd [#allocation6], %s21
      %s23 = sshll.u32 [#allocation5], 4
      %s24 = int_to_ptr.vmem [resolvable:$true] %s23
      %29 = dma.hbm_to_vmem [thread:$0]  %s2, 1024, %s24, [#allocation6], 256, 256, 16
    $region13: #{tpu_custom_call.1} parent=1 // pred_fallthru
      _
    // Predicated region
    $region14: #{tpu_custom_call.1} parent=1 // pred_check
      _
    $region15: #{tpu_custom_call.1} parent=1 // pred_check_branch
      %31 = sbr.rel (0) target = $region17
    $region16: #{tpu_custom_call.1} parent=1 // pred_region
      _
    $region17: #{tpu_custom_call.1} parent=1 // pred_fallthru
      _
    // Predicated region
    $region18: #{tpu_custom_call.1} parent=1 // pred_check
      _
    $region19: #{tpu_custom_call.1} parent=1 // pred_check_branch
      %33 = sbr.rel (0) target = $region21
    $region20: #{tpu_custom_call.1} parent=1 // pred_region
      _
    $region21: #{tpu_custom_call.1} parent=1 // pred_fallthru
      _
    // Predicated region
    $region22: #{tpu_custom_call.1} parent=1 // pred_check
      _
    $region23: #{tpu_custom_call.1} parent=1 // pred_check_branch
      %35 = sbr.rel (0) target = $region25
    $region24: #{tpu_custom_call.1} parent=1 // pred_region
      _
    $region25: #{tpu_custom_call.1} parent=1 // pred_fallthru
      _
    // Predicated region
    $region26: #{tpu_custom_call.1} parent=1 // pred_check
      _
    $region27: #{tpu_custom_call.1} parent=1 // pred_check_branch
      %37 = sbr.rel (0) target = $region29
    $region28: #{tpu_custom_call.1} parent=1 // pred_region
      %38 = dma.done [#allocation6], 1024
    $region29: #{tpu_custom_call.1} parent=1 // pred_fallthru
      _
    %s41 = sshll.u32 1, 14
    %s42 = sxor.u32 4294967295, %s41
    %s44 = sld [smem:[#allocation0]]
    %s45 = sadd.s32 2, %s44
    %s47 = sshll.u32 7, 26
    %s48 = sxor.u32 4294967295, %s47
    %s49 = sand.u32 0, %s48
    %s50 = sshll.u32 %s45, 26
    %s51 = sor.u32 %s49, %s50
    %s52 = sshll.u32 [#allocation2], 4
    %s53 = int_to_ptr.vmem [resolvable:$true] %s52
    %56 = sst [smem:[#allocation8]] 256
    %s57 = scalar_lea.smem [#allocation8], 1
    %58 = sst [smem:[%s57]] 256
    %s59 = scalar_lea.smem [#allocation8], 2
    %60 = sst [smem:[%s59]] 2
    %s61 = scalar_lea.smem [#allocation8], 3
    %62 = sst [smem:[%s61]] 64
    %s63 = scalar_lea.smem [#allocation8], 4
    %64 = sst [smem:[%s63]] 128
    %s65 = scalar_lea.smem [#allocation8], 5
    %66 = sst [smem:[%s65]] 2
    %s67 = scalar_lea.smem [#allocation8], 6
    %68 = sst [smem:[%s67]] 128
    %s69 = scalar_lea.smem [#allocation8], 7
    %70 = sst [smem:[%s69]] 64
    %s71 = scalar_lea.smem [#allocation8], 8
    %72 = sst [smem:[%s71]] 4
    %74 = dma.general %s4, 8192, %s53, [#allocation3], [#allocation7], [#allocation8], %s51, 0
    %v75 = vld [vmem:[%s1] sm:$0x1]
    %v76 = vld [vmem:[%s1 + $0x1] sm:$0x1]
    %v77 = vrsqrt.pop %v76
    %v78 = vmul.f32 %v76, %v77
    %vm79 = vcmp.eq.f32.partialorder %v76, inf
    %v80 = vsel %vm79, %v76, %v78
    %vm81 = vcmp.eq.f32.partialorder %v76, 0.0
    %v82 = vand.u32 %v76, 2147483648
    %v83 = vsel %vm81, %v82, %v80
    %v84 = vadd.f32 %v83, 1e-07
    %v85 = vrcp.pop %v84
    %v86 = vmul.f32 1.0, %v85
    %v87 = vld [vmem:[%s0] sm:$0xff]
    %v88 = vlaneseq
    %v89 = vshrl.u32 %v88, 7
    %v90 = vsub.s32 0, %v89
    %v91 = vrot.slane %v75, %v90
    %v92 = vsub.f32 %v87, %v91
    %v93 = vlaneseq
    %v94 = vshrl.u32 %v93, 7
    %v95 = vsub.s32 0, %v94
    %v96 = vrot.slane %v86, %v95
    %v97 = vmul.f32 %v92, %v96
    %v98 = vmax.f32 %v97, -5.0
    %v99 = vmin.f32 %v98, 5.0
    %v100 = vld [vmem:[%s3] ss:$4 sm:$0xf]
    %s101 = scalar_lea.vmem %s3, 1
    %v102 = vld [vmem:[%s101] ss:$4 sm:$0xf]
    %s103 = scalar_lea.vmem %s3, 2
    %v104 = vld [vmem:[%s103] ss:$4 sm:$0xf]
    %v105 = vpack.c.bf16 %v99, %v99
    %v106 = vld [vmem:[#allocation5] sm:$0xff]
    %v107 = vld [vmem:[#allocation5 + $0x8] sm:$0xff]
    %v108 = vld [vmem:[#allocation5 + $0x10] sm:$0xff]
    %v109 = vld [vmem:[#allocation5 + $0x18] sm:$0xff]
    %v110 = vld [vmem:[#allocation5 + $0x20] sm:$0xff]
    %v111 = vld [vmem:[#allocation5 + $0x28] sm:$0xff]
    %v112 = vld [vmem:[#allocation5 + $0x30] sm:$0xff]
    %v113 = vld [vmem:[#allocation5 + $0x38] sm:$0xff]
    %v115 = vlaneseq
    %v116 = vshrl.u32 %v115, 7
    %v117 = vsub.s32 0, %v116
    %v118 = vrot.slane %v100, %v117
    %v119 = vlaneseq
    %v120 = vshrl.u32 %v119, 7
    %v121 = vsub.s32 1, %v120
    %v122 = vrot.slane %v100, %v121
    %v123 = vlaneseq
    %v124 = vshrl.u32 %v123, 7
    %v125 = vsub.s32 2, %v124
    %v126 = vrot.slane %v100, %v125
    %v127 = vlaneseq
    %v128 = vshrl.u32 %v127, 7
    %v129 = vsub.s32 3, %v128
    %v130 = vrot.slane %v100, %v129
    %v143 = vunpack.c.l.b16 %v106
    %v144 = vunpack.c.h.b16 %v106
    %v145 = vunpack.c.l.b16 %v107
    %v146 = vunpack.c.h.b16 %v107
    %v147 = vunpack.c.l.b16 %v108
    %v148 = vunpack.c.h.b16 %v108
    %v149 = vunpack.c.l.b16 %v109
    %v150 = vunpack.c.h.b16 %v109
    %v151 = vunpack.c.l.b16 %v110
    %v152 = vunpack.c.h.b16 %v110
    %v153 = vunpack.c.l.b16 %v111
    %v154 = vunpack.c.h.b16 %v111
    %v155 = vunpack.c.l.b16 %v112
    %v156 = vunpack.c.h.b16 %v112
    %v157 = vunpack.c.l.b16 %v113
    %v158 = vunpack.c.h.b16 %v113
    %v159 = vpack.c.b16 %v147, %v143
    %v160 = vpack.c.b16 %v148, %v144
    %v161 = vpack.c.b16 %v149, %v145
    %v162 = vpack.c.b16 %v150, %v146
    %v163 = vpack.c.b16 %v155, %v151
    %v164 = vpack.c.b16 %v156, %v152
    %v165 = vpack.c.b16 %v157, %v153
    %v166 = vpack.c.b16 %v158, %v154
    %vm175 = vcmask 261120
    %v177 = vsel %vm175, %v105, 0
    %179 = vmatprep.subr.bf16.mxu0 %v160
    %180 = vmatpush1.bf16.msra.mxu0 %v159
    %181 = vmatprep.subr.bf16.mxu0 %v164
    %182 = vmatpush1.bf16.msra.mxu0 %v163
    %183 = vmatprep.subr.bf16.mxu0 0
    %184 = vmatpush1.bf16.msra.mxu0 0
    %185 = vmatprep.subr.bf16.mxu0 0
    %186 = vmatpush1.bf16.msra.mxu0 0
    %187 = vmatprep.subr.bf16.mxu0 0
    %188 = vmatpush1.bf16.msra.mxu0 0
    %189 = vmatprep.subr.bf16.mxu0 0
    %190 = vmatpush1.bf16.msra.mxu0 0
    %191 = vmatprep.subr.bf16.mxu0 0
    %192 = vmatpush1.bf16.msra.mxu0 0
    %193 = vmatprep.subr.bf16.mxu0 0
    %194 = vmatpush1.bf16.msra.mxu0 0
    %195 = vmatprep.subr.bf16.mxu0 0
    %196 = vmatpush1.bf16.msra.mxu0 0
    %197 = vmatprep.subr.bf16.mxu0 0
    %198 = vmatpush1.bf16.msra.mxu0 0
    %199 = vmatprep.subr.bf16.mxu0 0
    %200 = vmatpush1.bf16.msra.mxu0 0
    %201 = vmatprep.subr.bf16.mxu0 0
    %202 = vmatpush1.bf16.msra.mxu0 0
    %203 = vmatprep.subr.bf16.mxu0 0
    %204 = vmatpush1.bf16.msra.mxu0 0
    %205 = vmatprep.subr.bf16.mxu0 0
    %206 = vmatpush1.bf16.msra.mxu0 0
    %207 = vmatprep.subr.bf16.mxu0 0
    %208 = vmatpush1.bf16.msra.mxu0 0
    %209 = vmatprep.subr.bf16.mxu0 0
    %210 = vmatpush1.bf16.msra.mxu0 0
    %211 = vmatprep.mubr.bf16.mxu0 0
    %212 = vmatmul.mubr.bf16.gmra.mrb[0].mxu0 %v177
    %v213 = vpop.f32.mrb[0].mxu0
    %v214 = vadd.f32 %v118, %v213
    %v215 = vpop.f32.mrb[0].mxu0
    %v216 = vadd.f32 %v122, %v215
    %v217 = vpop.f32.mrb[0].mxu0
    %v218 = vpop.f32.mrb[0].mxu0
    %219 = vdwg.mxu0
    %220 = vmatprep.subr.bf16.mxu0 %v162
    %221 = vmatpush1.bf16.msra.mxu0 %v161
    %222 = vmatprep.subr.bf16.mxu0 %v166
    %223 = vmatpush1.bf16.msra.mxu0 %v165
    %224 = vmatprep.subr.bf16.mxu0 0
    %225 = vmatpush1.bf16.msra.mxu0 0
    %226 = vmatprep.subr.bf16.mxu0 0
    %227 = vmatpush1.bf16.msra.mxu0 0
    %228 = vmatprep.subr.bf16.mxu0 0
    %229 = vmatpush1.bf16.msra.mxu0 0
    %230 = vmatprep.subr.bf16.mxu0 0
    %231 = vmatpush1.bf16.msra.mxu0 0
    %232 = vmatprep.subr.bf16.mxu0 0
    %233 = vmatpush1.bf16.msra.mxu0 0
    %234 = vmatprep.subr.bf16.mxu0 0
    %235 = vmatpush1.bf16.msra.mxu0 0
    %236 = vmatprep.subr.bf16.mxu0 0
    %237 = vmatpush1.bf16.msra.mxu0 0
    %238 = vmatprep.subr.bf16.mxu0 0
    %239 = vmatpush1.bf16.msra.mxu0 0
    %240 = vmatprep.subr.bf16.mxu0 0
    %241 = vmatpush1.bf16.msra.mxu0 0
    %242 = vmatprep.subr.bf16.mxu0 0
    %243 = vmatpush1.bf16.msra.mxu0 0
    %244 = vmatprep.subr.bf16.mxu0 0
    %245 = vmatpush1.bf16.msra.mxu0 0
    %246 = vmatprep.subr.bf16.mxu0 0
    %247 = vmatpush1.bf16.msra.mxu0 0
    %248 = vmatprep.subr.bf16.mxu0 0
    %249 = vmatpush1.bf16.msra.mxu0 0
    %250 = vmatprep.subr.bf16.mxu0 0
    %251 = vmatpush1.bf16.msra.mxu0 0
    %252 = vmatprep.mubr.bf16.mxu0 0
    %253 = vmatmul.mubr.bf16.gmra.mrb[0].mxu0 %v177
    %v254 = vpop.f32.mrb[0].mxu0
    %v255 = vadd.f32 %v126, %v254
    %v256 = vpop.f32.mrb[0].mxu0
    %v257 = vadd.f32 %v130, %v256
    %v258 = vpop.f32.mrb[0].mxu0
    %v259 = vpop.f32.mrb[0].mxu0
    %260 = vdwg.mxu0
    %v261 = vrot.slane %v214, 4
    %v262 = vadd.f32 %v214, %v261
    %v263 = vrot.slane %v262, 2
    %v264 = vadd.f32 %v262, %v263
    %v265 = vrot.slane %v264, 1
    %v266 = vadd.f32 %v264, %v265
    %v267 = vrot.slane %v216, 4
    %v268 = vadd.f32 %v216, %v267
    %v269 = vrot.slane %v268, 2
    %v270 = vadd.f32 %v268, %v269
    %v271 = vrot.slane %v270, 1
    %v272 = vadd.f32 %v270, %v271
    %v273 = vrot.slane %v255, 4
    %v274 = vadd.f32 %v255, %v273
    %v275 = vrot.slane %v274, 2
    %v276 = vadd.f32 %v274, %v275
    %v277 = vrot.slane %v276, 1
    %v278 = vadd.f32 %v276, %v277
    %v279 = vrot.slane %v257, 4
    %v280 = vadd.f32 %v257, %v279
    %v281 = vrot.slane %v280, 2
    %v282 = vadd.f32 %v280, %v281
    %v283 = vrot.slane %v282, 1
    %v284 = vadd.f32 %v282, %v283
    %v285 = vrcp.pop 8.0
    %v286 = vmul.f32 %v266, %v285
    %v287 = vmul.f32 %v272, %v285
    %v288 = vmul.f32 %v278, %v285
    %v289 = vmul.f32 %v284, %v285
    %v290 = vmul.f32 %v214, %v214
    %v291 = vmul.f32 %v216, %v216
    %v292 = vmul.f32 %v255, %v255
    %v293 = vmul.f32 %v257, %v257
    %v294 = vrot.slane %v290, 4
    %v295 = vadd.f32 %v290, %v294
    %v296 = vrot.slane %v295, 2
    %v297 = vadd.f32 %v295, %v296
    %v298 = vrot.slane %v297, 1
    %v299 = vadd.f32 %v297, %v298
    %v300 = vrot.slane %v291, 4
    %v301 = vadd.f32 %v291, %v300
    %v302 = vrot.slane %v301, 2
    %v303 = vadd.f32 %v301, %v302
    %v304 = vrot.slane %v303, 1
    %v305 = vadd.f32 %v303, %v304
    %v306 = vrot.slane %v292, 4
    %v307 = vadd.f32 %v292, %v306
    %v308 = vrot.slane %v307, 2
    %v309 = vadd.f32 %v307, %v308
    %v310 = vrot.slane %v309, 1
    %v311 = vadd.f32 %v309, %v310
    %v312 = vrot.slane %v293, 4
    %v313 = vadd.f32 %v293, %v312
    %v314 = vrot.slane %v313, 2
    %v315 = vadd.f32 %v313, %v314
    %v316 = vrot.slane %v315, 1
    %v317 = vadd.f32 %v315, %v316
    %v318 = vmul.f32 %v299, %v285
    %v319 = vmul.f32 %v305, %v285
    %v320 = vmul.f32 %v311, %v285
    %v321 = vmul.f32 %v317, %v285
    %v322 = vmul.f32 %v286, %v286
    %v323 = vmul.f32 %v287, %v287
    %v324 = vmul.f32 %v288, %v288
    %v325 = vmul.f32 %v289, %v289
    %v326 = vsub.f32 %v318, %v322
    %v327 = vsub.f32 %v319, %v323
    %v328 = vsub.f32 %v320, %v324
    %v329 = vsub.f32 %v321, %v325
    %v330 = vmax.f32 %v326, 0.0
    %v331 = vmax.f32 %v327, 0.0
    %v332 = vmax.f32 %v328, 0.0
    %v333 = vmax.f32 %v329, 0.0
    %v334 = vadd.f32 %v330, 1e-05
    %v335 = vadd.f32 %v331, 1e-05
    %v336 = vadd.f32 %v332, 1e-05
    %v337 = vadd.f32 %v333, 1e-05
    %v338 = vrsqrt.pop %v334
    %v339 = vrsqrt.pop %v335
    %v340 = vrsqrt.pop %v336
    %v341 = vrsqrt.pop %v337
    %v346 = vcombine.low %v338, %v339
    %v347 = vcombine.low %v340, %v341
    %v349 = vunpack.c.l.s4 1966171168
    %v350 = vunpack.c.0.s8 %v349
    %v351 = vlaneseq
    %v352 = vshrl.u32 %v351, 7
    %v353 = vsub.s32 %v350, %v352
    %v354 = vrot.slane %v346, %v353
    %v356 = vunpack.c.l.s4 1966171168
    %v357 = vunpack.c.0.s8 %v356
    %v358 = vlaneseq
    %v359 = vshrl.u32 %v358, 7
    %v360 = vsub.s32 %v357, %v359
    %v361 = vrot.slane %v347, %v360
    %v362 = vcombine.low %v354, %v361
    %v364 = vunpack.c.l.s4 1966171168
    %v365 = vunpack.c.0.s8 %v364
    %v366 = vlaneseq
    %v367 = vshrl.u32 %v366, 7
    %v368 = vsub.s32 %v365, %v367
    %v369 = vrot.slane %v362, %v368
    %v371 = vmul.f32 %v102, %v369
    %v373 = vlaneseq
    %v374 = vshrl.u32 %v373, 7
    %v375 = vsub.s32 0, %v374
    %v376 = vrot.slane %v371, %v375
    %v377 = vlaneseq
    %v378 = vshrl.u32 %v377, 7
    %v379 = vsub.s32 1, %v378
    %v380 = vrot.slane %v371, %v379
    %v381 = vlaneseq
    %v382 = vshrl.u32 %v381, 7
    %v383 = vsub.s32 2, %v382
    %v384 = vrot.slane %v371, %v383
    %v385 = vlaneseq
    %v386 = vshrl.u32 %v385, 7
    %v387 = vsub.s32 3, %v386
    %v388 = vrot.slane %v371, %v387
    %v393 = vmul.f32 %v214, %v376
    %v394 = vmul.f32 %v216, %v380
    %v395 = vmul.f32 %v255, %v384
    %v396 = vmul.f32 %v257, %v388
    %v397 = vmul.f32 %v286, %v376
    %v398 = vmul.f32 %v287, %v380
    %v399 = vmul.f32 %v288, %v384
    %v400 = vmul.f32 %v289, %v388
    %v405 = vcombine.low %v397, %v398
    %v406 = vcombine.low %v399, %v400
    %v408 = vunpack.c.l.s4 1966171168
    %v409 = vunpack.c.0.s8 %v408
    %v410 = vlaneseq
    %v411 = vshrl.u32 %v410, 7
    %v412 = vsub.s32 %v409, %v411
    %v413 = vrot.slane %v405, %v412
    %v415 = vunpack.c.l.s4 1966171168
    %v416 = vunpack.c.0.s8 %v415
    %v417 = vlaneseq
    %v418 = vshrl.u32 %v417, 7
    %v419 = vsub.s32 %v416, %v418
    %v420 = vrot.slane %v406, %v419
    %v421 = vcombine.low %v413, %v420
    %v423 = vunpack.c.l.s4 1966171168
    %v424 = vunpack.c.0.s8 %v423
    %v425 = vlaneseq
    %v426 = vshrl.u32 %v425, 7
    %v427 = vsub.s32 %v424, %v426
    %v428 = vrot.slane %v421, %v427
    %v430 = vsub.f32 %v104, %v428
    %v432 = vlaneseq
    %v433 = vshrl.u32 %v432, 7
    %v434 = vsub.s32 0, %v433
    %v435 = vrot.slane %v430, %v434
    %v436 = vlaneseq
    %v437 = vshrl.u32 %v436, 7
    %v438 = vsub.s32 1, %v437
    %v439 = vrot.slane %v430, %v438
    %v440 = vlaneseq
    %v441 = vshrl.u32 %v440, 7
    %v442 = vsub.s32 2, %v441
    %v443 = vrot.slane %v430, %v442
    %v444 = vlaneseq
    %v445 = vshrl.u32 %v444, 7
    %v446 = vsub.s32 3, %v445
    %v447 = vrot.slane %v430, %v446
    %v452 = vadd.f32 %v393, %v435
    %v453 = vadd.f32 %v394, %v439
    %v454 = vadd.f32 %v395, %v443
    %v455 = vadd.f32 %v396, %v447
    %v456 = vmax.f32 %v452, 0.0
    %v457 = vmax.f32 %v453, 0.0
    %v458 = vmax.f32 %v454, 0.0
    %v459 = vmax.f32 %v455, 0.0
    %v460 = vpack.c.bf16 %v456, %v456
    %v461 = vpack.c.bf16 %v457, %v457
    %v462 = vpack.c.bf16 %v458, %v458
    %v463 = vpack.c.bf16 %v459, %v459
    %s464 = smul.u32 4, 2
    %s465 = smul.u32 %s464, 32
    %s466 = smul.u32 %s465, 2
    %s467 = sshll.u32 %s466, 4
    %468 = dma.done [#allocation3], %s467
    %v469 = vld [vmem:[#allocation2] sm:$0xff]
    %v470 = vld [vmem:[#allocation2 + $0x8] sm:$0xff]
    %v471 = vld [vmem:[#allocation2 + $0x10] sm:$0xff]
    %v472 = vld [vmem:[#allocation2 + $0x18] sm:$0xff]
    %v473 = vld [vmem:[#allocation2 + $0x20] sm:$0xff]
    %v474 = vld [vmem:[#allocation2 + $0x28] sm:$0xff]
    %v475 = vld [vmem:[#allocation2 + $0x30] sm:$0xff]
    %v476 = vld [vmem:[#allocation2 + $0x38] sm:$0xff]
    %v477 = vld [vmem:[#allocation2 + $0x40] sm:$0xff]
    %v478 = vld [vmem:[#allocation2 + $0x48] sm:$0xff]
    %v479 = vld [vmem:[#allocation2 + $0x50] sm:$0xff]
    %v480 = vld [vmem:[#allocation2 + $0x58] sm:$0xff]
    %v481 = vld [vmem:[#allocation2 + $0x60] sm:$0xff]
    %v482 = vld [vmem:[#allocation2 + $0x68] sm:$0xff]
    %v483 = vld [vmem:[#allocation2 + $0x70] sm:$0xff]
    %v484 = vld [vmem:[#allocation2 + $0x78] sm:$0xff]
    %v485 = vld [vmem:[#allocation2 + $0x80] sm:$0xff]
    %v486 = vld [vmem:[#allocation2 + $0x88] sm:$0xff]
    %v487 = vld [vmem:[#allocation2 + $0x90] sm:$0xff]
    %v488 = vld [vmem:[#allocation2 + $0x98] sm:$0xff]
    %v489 = vld [vmem:[#allocation2 + $0xa0] sm:$0xff]
    %v490 = vld [vmem:[#allocation2 + $0xa8] sm:$0xff]
    %v491 = vld [vmem:[#allocation2 + $0xb0] sm:$0xff]
    %v492 = vld [vmem:[#allocation2 + $0xb8] sm:$0xff]
    %v493 = vld [vmem:[#allocation2 + $0xc0] sm:$0xff]
    %v494 = vld [vmem:[#allocation2 + $0xc8] sm:$0xff]
    %v495 = vld [vmem:[#allocation2 + $0xd0] sm:$0xff]
    %v496 = vld [vmem:[#allocation2 + $0xd8] sm:$0xff]
    %v497 = vld [vmem:[#allocation2 + $0xe0] sm:$0xff]
    %v498 = vld [vmem:[#allocation2 + $0xe8] sm:$0xff]
    %v499 = vld [vmem:[#allocation2 + $0xf0] sm:$0xff]
    %v500 = vld [vmem:[#allocation2 + $0xf8] sm:$0xff]
    %v501 = vld [vmem:[%s5] sm:$0x77]
    %v503 = vlaneseq
    %v504 = vshrl.u32 %v503, 7
    %v505 = vsub.s32 0, %v504
    %v506 = vrot.slane %v501, %v505
    %v507 = vlaneseq
    %v508 = vshrl.u32 %v507, 7
    %v509 = vsub.s32 4, %v508
    %v510 = vrot.slane %v501, %v509
    %v513 = vlaneseq
    %v514 = vshrl.u32 %v513, 7
    %v515 = vsub.s32 0, %v514
    %v516 = vrot.slane %v506, %v515
    %v517 = vlaneseq
    %v518 = vshrl.u32 %v517, 7
    %v519 = vsub.s32 0, %v518
    %v520 = vrot.slane %v510, %v519
    %521 = vmatprep.subr.bf16.mxu0 %v470
    %522 = vmatpush1.bf16.msra.mxu0 %v469
    %523 = vmatprep.subr.bf16.mxu0 %v472
    %524 = vmatpush1.bf16.msra.mxu0 %v471
    %525 = vmatprep.subr.bf16.mxu0 %v474
    %526 = vmatpush1.bf16.msra.mxu0 %v473
    %527 = vmatprep.subr.bf16.mxu0 %v476
    %528 = vmatpush1.bf16.msra.mxu0 %v475
    %529 = vmatprep.subr.bf16.mxu0 %v478
    %530 = vmatpush1.bf16.msra.mxu0 %v477
    %531 = vmatprep.subr.bf16.mxu0 %v480
    %532 = vmatpush1.bf16.msra.mxu0 %v479
    %533 = vmatprep.subr.bf16.mxu0 %v482
    %534 = vmatpush1.bf16.msra.mxu0 %v481
    %535 = vmatprep.subr.bf16.mxu0 %v484
    %536 = vmatpush1.bf16.msra.mxu0 %v483
    %537 = vmatprep.subr.bf16.mxu0 %v486
    %538 = vmatpush1.bf16.msra.mxu0 %v485
    %539 = vmatprep.subr.bf16.mxu0 %v488
    %540 = vmatpush1.bf16.msra.mxu0 %v487
    %541 = vmatprep.subr.bf16.mxu0 %v490
    %542 = vmatpush1.bf16.msra.mxu0 %v489
    %543 = vmatprep.subr.bf16.mxu0 %v492
    %544 = vmatpush1.bf16.msra.mxu0 %v491
    %545 = vmatprep.subr.bf16.mxu0 %v494
    %546 = vmatpush1.bf16.msra.mxu0 %v493
    %547 = vmatprep.subr.bf16.mxu0 %v496
    %548 = vmatpush1.bf16.msra.mxu0 %v495
    %549 = vmatprep.subr.bf16.mxu0 %v498
    %550 = vmatpush1.bf16.msra.mxu0 %v497
    %551 = vmatprep.subr.bf16.mxu0 %v500
    %552 = vmatpush1.bf16.msra.mxu0 %v499
    %553 = vmatprep.mubr.bf16.mxu0 %v461
    %554 = vmatmul.mubr.bf16.gmra.mrb[0].mxu0 %v460
    %v555 = vpop.f32.mrb[0].mxu0
    %v556 = vadd.f32 %v516, %v555
    %v557 = vpop.f32.mrb[0].mxu0
    %v558 = vadd.f32 %v520, %v557
    %v559 = vpop.f32.mrb[0].mxu0
    %v560 = vpop.f32.mrb[0].mxu0
    %561 = vdwg.mxu0
    %v562 = vrot.slane %v556, 4
    %v563 = vadd.f32 %v556, %v562
    %v564 = vrot.slane %v563, 2
    %v565 = vadd.f32 %v563, %v564
    %v566 = vrot.slane %v565, 1
    %v567 = vadd.f32 %v565, %v566
    %v568 = vrot.slane %v558, 4
    %v569 = vadd.f32 %v558, %v568
    %v570 = vrot.slane %v569, 2
    %v571 = vadd.f32 %v569, %v570
    %v572 = vrot.slane %v571, 1
    %v573 = vadd.f32 %v571, %v572
    %v574 = vmul.f32 %v567, %v285
    %v575 = vmul.f32 %v573, %v285
    %v576 = vmul.f32 %v556, %v556
    %v577 = vmul.f32 %v558, %v558
    %v578 = vrot.slane %v576, 4
    %v579 = vadd.f32 %v576, %v578
    %v580 = vrot.slane %v579, 2
    %v581 = vadd.f32 %v579, %v580
    %v582 = vrot.slane %v581, 1
    %v583 = vadd.f32 %v581, %v582
    %v584 = vrot.slane %v577, 4
    %v585 = vadd.f32 %v577, %v584
    %v586 = vrot.slane %v585, 2
    %v587 = vadd.f32 %v585, %v586
    %v588 = vrot.slane %v587, 1
    %v589 = vadd.f32 %v587, %v588
    %v590 = vmul.f32 %v583, %v285
    %v591 = vmul.f32 %v589, %v285
    %v592 = vmul.f32 %v574, %v574
    %v593 = vmul.f32 %v575, %v575
    %v594 = vsub.f32 %v590, %v592
    %v595 = vsub.f32 %v591, %v593
    %v596 = vmax.f32 %v594, 0.0
    %v597 = vmax.f32 %v595, 0.0
    %v598 = vadd.f32 %v596, 1e-05
    %v599 = vadd.f32 %v597, 1e-05
    %v600 = vrsqrt.pop %v598
    %v601 = vrsqrt.pop %v599
    %v604 = vcombine.low %v600, %v601
    %v605 = vrot.slane %v604, 7
    %v607 = vmul.f32 %v501, %v605
    %v609 = vlaneseq
    %v610 = vshrl.u32 %v609, 7
    %v611 = vsub.s32 1, %v610
    %v612 = vrot.slane %v607, %v611
    %v613 = vlaneseq
    %v614 = vshrl.u32 %v613, 7
    %v615 = vsub.s32 5, %v614
    %v616 = vrot.slane %v607, %v615
    %v619 = vlaneseq
    %v620 = vshrl.u32 %v619, 7
    %v621 = vsub.s32 1, %v620
    %v622 = vrot.slane %v612, %v621
    %v623 = vlaneseq
    %v624 = vshrl.u32 %v623, 7
    %v625 = vsub.s32 1, %v624
    %v626 = vrot.slane %v616, %v625
    %v627 = vmul.f32 %v556, %v622
    %v628 = vmul.f32 %v558, %v626
    %v629 = vmul.f32 %v574, %v612
    %v630 = vmul.f32 %v575, %v616
    %v633 = vcombine.low %v629, %v630
    %v634 = vrot.slane %v633, 6
    %v636 = vsub.f32 %v501, %v634
    %v638 = vlaneseq
    %v639 = vshrl.u32 %v638, 7
    %v640 = vsub.s32 2, %v639
    %v641 = vrot.slane %v636, %v640
    %v642 = vlaneseq
    %v643 = vshrl.u32 %v642, 7
    %v644 = vsub.s32 6, %v643
    %v645 = vrot.slane %v636, %v644
    %v648 = vlaneseq
    %v649 = vshrl.u32 %v648, 7
    %v650 = vsub.s32 2, %v649
    %v651 = vrot.slane %v641, %v650
    %v652 = vlaneseq
    %v653 = vshrl.u32 %v652, 7
    %v654 = vsub.s32 2, %v653
    %v655 = vrot.slane %v645, %v654
    %v656 = vadd.f32 %v627, %v651
    %v657 = vadd.f32 %v628, %v655
    %v658 = vmax.f32 %v656, 0.0
    %v659 = vmax.f32 %v657, 0.0
    %s660 = scalar_lea.vmem [#allocation2], 256
    %v661 = vld [vmem:[%s660] sm:$0xff]
    %v662 = vld [vmem:[%s660 + $0x8] sm:$0xff]
    %v663 = vld [vmem:[%s660 + $0x10] sm:$0xff]
    %v664 = vld [vmem:[%s660 + $0x18] sm:$0xff]
    %v665 = vld [vmem:[%s660 + $0x20] sm:$0xff]
    %v666 = vld [vmem:[%s660 + $0x28] sm:$0xff]
    %v667 = vld [vmem:[%s660 + $0x30] sm:$0xff]
    %v668 = vld [vmem:[%s660 + $0x38] sm:$0xff]
    %v669 = vld [vmem:[%s660 + $0x40] sm:$0xff]
    %v670 = vld [vmem:[%s660 + $0x48] sm:$0xff]
    %v671 = vld [vmem:[%s660 + $0x50] sm:$0xff]
    %v672 = vld [vmem:[%s660 + $0x58] sm:$0xff]
    %v673 = vld [vmem:[%s660 + $0x60] sm:$0xff]
    %v674 = vld [vmem:[%s660 + $0x68] sm:$0xff]
    %v675 = vld [vmem:[%s660 + $0x70] sm:$0xff]
    %v676 = vld [vmem:[%s660 + $0x78] sm:$0xff]
    %v677 = vld [vmem:[%s660 + $0x80] sm:$0xff]
    %v678 = vld [vmem:[%s660 + $0x88] sm:$0xff]
    %v679 = vld [vmem:[%s660 + $0x90] sm:$0xff]
    %v680 = vld [vmem:[%s660 + $0x98] sm:$0xff]
    %v681 = vld [vmem:[%s660 + $0xa0] sm:$0xff]
    %v682 = vld [vmem:[%s660 + $0xa8] sm:$0xff]
    %v683 = vld [vmem:[%s660 + $0xb0] sm:$0xff]
    %v684 = vld [vmem:[%s660 + $0xb8] sm:$0xff]
    %v685 = vld [vmem:[%s660 + $0xc0] sm:$0xff]
    %v686 = vld [vmem:[%s660 + $0xc8] sm:$0xff]
    %v687 = vld [vmem:[%s660 + $0xd0] sm:$0xff]
    %v688 = vld [vmem:[%s660 + $0xd8] sm:$0xff]
    %v689 = vld [vmem:[%s660 + $0xe0] sm:$0xff]
    %v690 = vld [vmem:[%s660 + $0xe8] sm:$0xff]
    %v691 = vld [vmem:[%s660 + $0xf0] sm:$0xff]
    %v692 = vld [vmem:[%s660 + $0xf8] sm:$0xff]
    %s693 = scalar_lea.vmem %s5, 8
    %v694 = vld [vmem:[%s693] sm:$0x77]
    %v696 = vlaneseq
    %v697 = vshrl.u32 %v696, 7
    %v698 = vsub.s32 0, %v697
    %v699 = vrot.slane %v694, %v698
    %v700 = vlaneseq
    %v701 = vshrl.u32 %v700, 7
    %v702 = vsub.s32 4, %v701
    %v703 = vrot.slane %v694, %v702
    %v706 = vlaneseq
    %v707 = vshrl.u32 %v706, 7
    %v708 = vsub.s32 0, %v707
    %v709 = vrot.slane %v699, %v708
    %v710 = vlaneseq
    %v711 = vshrl.u32 %v710, 7
    %v712 = vsub.s32 0, %v711
    %v713 = vrot.slane %v703, %v712
    %714 = vmatprep.subr.bf16.mxu0 %v662
    %715 = vmatpush1.bf16.msra.mxu0 %v661
    %716 = vmatprep.subr.bf16.mxu0 %v664
    %717 = vmatpush1.bf16.msra.mxu0 %v663
    %718 = vmatprep.subr.bf16.mxu0 %v666
    %719 = vmatpush1.bf16.msra.mxu0 %v665
    %720 = vmatprep.subr.bf16.mxu0 %v668
    %721 = vmatpush1.bf16.msra.mxu0 %v667
    %722 = vmatprep.subr.bf16.mxu0 %v670
    %723 = vmatpush1.bf16.msra.mxu0 %v669
    %724 = vmatprep.subr.bf16.mxu0 %v672
    %725 = vmatpush1.bf16.msra.mxu0 %v671
    %726 = vmatprep.subr.bf16.mxu0 %v674
    %727 = vmatpush1.bf16.msra.mxu0 %v673
    %728 = vmatprep.subr.bf16.mxu0 %v676
    %729 = vmatpush1.bf16.msra.mxu0 %v675
    %730 = vmatprep.subr.bf16.mxu0 %v678
    %731 = vmatpush1.bf16.msra.mxu0 %v677
    %732 = vmatprep.subr.bf16.mxu0 %v680
    %733 = vmatpush1.bf16.msra.mxu0 %v679
    %734 = vmatprep.subr.bf16.mxu0 %v682
    %735 = vmatpush1.bf16.msra.mxu0 %v681
    %736 = vmatprep.subr.bf16.mxu0 %v684
    %737 = vmatpush1.bf16.msra.mxu0 %v683
    %738 = vmatprep.subr.bf16.mxu0 %v686
    %739 = vmatpush1.bf16.msra.mxu0 %v685
    %740 = vmatprep.subr.bf16.mxu0 %v688
    %741 = vmatpush1.bf16.msra.mxu0 %v687
    %742 = vmatprep.subr.bf16.mxu0 %v690
    %743 = vmatpush1.bf16.msra.mxu0 %v689
    %744 = vmatprep.subr.bf16.mxu0 %v692
    %745 = vmatpush1.bf16.msra.mxu0 %v691
    %746 = vmatprep.mubr.bf16.mxu0 %v463
    %747 = vmatmul.mubr.bf16.gmra.mrb[0].mxu0 %v462
    %v748 = vpop.f32.mrb[0].mxu0
    %v749 = vadd.f32 %v709, %v748
    %v750 = vpop.f32.mrb[0].mxu0
    %v751 = vadd.f32 %v713, %v750
    %v752 = vpop.f32.mrb[0].mxu0
    %v753 = vpop.f32.mrb[0].mxu0
    %754 = vdwg.mxu0
    %v755 = vrot.slane %v749, 4
    %v756 = vadd.f32 %v749, %v755
    %v757 = vrot.slane %v756, 2
    %v758 = vadd.f32 %v756, %v757
    %v759 = vrot.slane %v758, 1
    %v760 = vadd.f32 %v758, %v759
    %v761 = vrot.slane %v751, 4
    %v762 = vadd.f32 %v751, %v761
    %v763 = vrot.slane %v762, 2
    %v764 = vadd.f32 %v762, %v763
    %v765 = vrot.slane %v764, 1
    %v766 = vadd.f32 %v764, %v765
    %v767 = vmul.f32 %v760, %v285
    %v768 = vmul.f32 %v766, %v285
    %v769 = vmul.f32 %v749, %v749
    %v770 = vmul.f32 %v751, %v751
    %v771 = vrot.slane %v769, 4
    %v772 = vadd.f32 %v769, %v771
    %v773 = vrot.slane %v772, 2
    %v774 = vadd.f32 %v772, %v773
    %v775 = vrot.slane %v774, 1
    %v776 = vadd.f32 %v774, %v775
    %v777 = vrot.slane %v770, 4
    %v778 = vadd.f32 %v770, %v777
    %v779 = vrot.slane %v778, 2
    %v780 = vadd.f32 %v778, %v779
    %v781 = vrot.slane %v780, 1
    %v782 = vadd.f32 %v780, %v781
    %v783 = vmul.f32 %v776, %v285
    %v784 = vmul.f32 %v782, %v285
    %v785 = vmul.f32 %v767, %v767
    %v786 = vmul.f32 %v768, %v768
    %v787 = vsub.f32 %v783, %v785
    %v788 = vsub.f32 %v784, %v786
    %v789 = vmax.f32 %v787, 0.0
    %v790 = vmax.f32 %v788, 0.0
    %v791 = vadd.f32 %v789, 1e-05
    %v792 = vadd.f32 %v790, 1e-05
    %v793 = vrsqrt.pop %v791
    %v794 = vrsqrt.pop %v792
    %v797 = vcombine.low %v793, %v794
    %v798 = vrot.slane %v797, 7
    %v800 = vmul.f32 %v694, %v798
    %v802 = vlaneseq
    %v803 = vshrl.u32 %v802, 7
    %v804 = vsub.s32 1, %v803
    %v805 = vrot.slane %v800, %v804
    %v806 = vlaneseq
    %v807 = vshrl.u32 %v806, 7
    %v808 = vsub.s32 5, %v807
    %v809 = vrot.slane %v800, %v808
    %v812 = vlaneseq
    %v813 = vshrl.u32 %v812, 7
    %v814 = vsub.s32 1, %v813
    %v815 = vrot.slane %v805, %v814
    %v816 = vlaneseq
    %v817 = vshrl.u32 %v816, 7
    %v818 = vsub.s32 1, %v817
    %v819 = vrot.slane %v809, %v818
    %v820 = vmul.f32 %v749, %v815
    %v821 = vmul.f32 %v751, %v819
    %v822 = vmul.f32 %v767, %v805
    %v823 = vmul.f32 %v768, %v809
    %v826 = vcombine.low %v822, %v823
    %v827 = vrot.slane %v826, 6
    %v829 = vsub.f32 %v694, %v827
    %v831 = vlaneseq
    %v832 = vshrl.u32 %v831, 7
    %v833 = vsub.s32 2, %v832
    %v834 = vrot.slane %v829, %v833
    %v835 = vlaneseq
    %v836 = vshrl.u32 %v835, 7
    %v837 = vsub.s32 6, %v836
    %v838 = vrot.slane %v829, %v837
    %v841 = vlaneseq
    %v842 = vshrl.u32 %v841, 7
    %v843 = vsub.s32 2, %v842
    %v844 = vrot.slane %v834, %v843
    %v845 = vlaneseq
    %v846 = vshrl.u32 %v845, 7
    %v847 = vsub.s32 2, %v846
    %v848 = vrot.slane %v838, %v847
    %v849 = vadd.f32 %v820, %v844
    %v850 = vadd.f32 %v821, %v848
    %v851 = vmax.f32 %v849, 0.0
    %v852 = vmax.f32 %v850, 0.0
    %v853 = vsub.f32 %v658, %v851
    %v854 = vsub.f32 %v659, %v852
    %v855 = vmul.f32 %v853, %v853
    %v856 = vmul.f32 %v854, %v854
    %v857 = vadd.f32 %v855, %v856
    %858 = vadd.xlane.f32.xlu0 %v857
    %v859 = vpop.xlane.xlu0 %858
    %s860 = sld [smem:[#allocation4]]
    %v861 = vstv %s860
    %v862 = vmul.f32 %v859, %v861
    %vm863 = vcmask 7168
    %864 = vst.msk [vmem:[%s7] sm:$0xff] %vm863, %v862
    // Predicated region
    $region30: #{tpu_custom_call.1} parent=1 // pred_check
      _
    $region31: #{tpu_custom_call.1} parent=1 // pred_check_branch
      %866 = sbr.rel (0) target = $region33
    $region32: #{tpu_custom_call.1} parent=1 // pred_region
      _
    $region33: #{tpu_custom_call.1} parent=1 // pred_fallthru
      _
    // Predicated region
    $region34: #{tpu_custom_call.1} parent=1 // pred_check
      _
    $region35: #{tpu_custom_call.1} parent=1 // pred_check_branch
      %868 = sbr.rel (0) target = $region37
    $region36: #{tpu_custom_call.1} parent=1 // pred_region
      _
    $region37: #{tpu_custom_call.1} parent=1 // pred_fallthru
      _
    %869 = vsyncpa [#allocation6], 1
  %870 = vsyncmov [#allocation3]
  %s871 = vpop.sfrf %870
  %p872 = scmp.eq.s32.totalorder %s871, 0
  %p873 = pneg %p872
  %875 = shalt.err (%p873)

</llo_original>
